<compile_context>
chip_gen: v6e
topology: v6e:2x2x1
jax: 0.10.0
libtpu: 0.0.40
codegen_flags: <defaults>
</compile_context>

<pallas_src>
import functools

import jax
import jax.numpy as jnp
from jax.experimental import pallas as pl
from jax.experimental.pallas import tpu as pltpu


def _round_up(n, m):
    return ((n + m - 1) // m) * m


def _cdiv(a, b):
    return -(-a // b)


# --------------------------------------------------------------------------------------------
# Kernel: one batch tile (TB rows) of the whole forward pass; weights stay VMEM-resident.
# --------------------------------------------------------------------------------------------
def simplenet_v2_kernel(
    x_ref,
    w1_ref, b1_ref,
    wa1_ref, ba1_ref, wb1_ref, bb1_ref,
    wa2_ref, ba2_ref, wb2_ref, bb2_ref,
    wa3_ref, ba3_ref,
    wf_ref, bf_ref,          # fused: wb3 @ w2 -> (4H, 1),  bb3 @ w2 + b2 -> (1, 1)
    out_ref,
):
    def linear(h_bf16, w_ref, b_ref):
        # bf16 x bf16 -> f32 accumulate on the MXU; bias add in f32 on the VPU.
        return jnp.dot(h_bf16, w_ref[...], preferred_element_type=jnp.float32) + b_ref[...]

    def simple_block(h_f32, wa_ref, ba_ref, wb_ref, bb_ref):
        t = jnp.maximum(linear(h_f32.astype(jnp.bfloat16), wa_ref, ba_ref), 0.0)
        return linear(t.astype(jnp.bfloat16), wb_ref, bb_ref)

    x = x_ref[...].astype(jnp.bfloat16)                                   # in-kernel f32->bf16 cast
    h = linear(x, w1_ref, b1_ref)                                         # linear_1
    h = simple_block(h, wa1_ref, ba1_ref, wb1_ref, bb1_ref)               # block_1
    h = simple_block(h, wa2_ref, ba2_ref, wb2_ref, bb2_ref)               # block_2

    # block_3 with linear_2 folded into its output projection (exact in real arithmetic):
    #   relu(h @ wa3 + ba3) @ (wb3 @ w2) + (bb3 @ w2 + b2)
    t = jnp.maximum(linear(h.astype(jnp.bfloat16), wa3_ref, ba3_ref), 0.0)
    out_ref[...] = linear(t.astype(jnp.bfloat16), wf_ref, bf_ref)         # (TB, 1) f32


# --------------------------------------------------------------------------------------------
# Parameter init (torch nn.Linear semantics) and kernel-weight preparation.
# --------------------------------------------------------------------------------------------
def init_params(key, input_size, hidden_size):
    """nn.Linear-style U(-1/sqrt(fan_in), 1/sqrt(fan_in)) init; weights kept in f32 master copy,
    pre-transposed to (in_features, out_features)."""

    def linear_init(k, fan_in, fan_out):
        kw, kb = jax.random.split(k)
        bound = 1.0 / float(fan_in) ** 0.5
        w = jax.random.uniform(kw, (fan_in, fan_out), jnp.float32, -bound, bound)
        b = jax.random.uniform(kb, (1, fan_out), jnp.float32, -bound, bound)
        return w, b

    keys = jax.random.split(key, 8)
    p = {}
    p["w1"], p["b1"] = linear_init(keys[0], input_size, hidden_size)
    for i in (1, 2, 3):
        p[f"wa{i}"], p[f"ba{i}"] = linear_init(keys[2 * i - 1], hidden_size, hidden_size * 4)
        p[f"wb{i}"], p[f"bb{i}"] = linear_init(keys[2 * i], hidden_size * 4, hidden_size)
    p["w2"], p["b2"] = linear_init(keys[7], hidden_size, 1)               # (H, 1), (1, 1)
    return p


def prepare_weights(params):
    """Build the kernel weight tuple: matmul weights in bf16 (MXU feeds), biases in f32, and the
    final Linear(hidden->1) folded into block_3's output projection (computed in f32)."""
    bf16 = jnp.bfloat16
    w_fused = (params["wb3"] @ params["w2"]).astype(bf16)                 # (4H, 1)
    b_fused = params["bb3"] @ params["w2"] + params["b2"]                 # (1, 1) f32
    return (
        params["w1"].astype(bf16), params["b1"],
        params["wa1"].astype(bf16), params["ba1"], params["wb1"].astype(bf16), params["bb1"],
        params["wa2"].astype(bf16), params["ba2"], params["wb2"].astype(bf16), params["bb2"],
        params["wa3"].astype(bf16), params["ba3"],
        w_fused, b_fused,
    )


# --------------------------------------------------------------------------------------------
# Wrapper.
# --------------------------------------------------------------------------------------------
def _choose_batch_tile(B, batch_tile):
    """Pick (TB, B_pad). TB only needs to be a multiple of 8 here (lane dims of x and out equal
    their full array dims), so we go as fat as the batch allows, keeping an even grid for v7x."""
    B8 = _round_up(B, 8)
    TB = min(_round_up(batch_tile, 8), B8)
    G = _cdiv(B8, TB)
    if G == 1 and B8 >= 512:
        # Split one big tile in two so a v7x megacore keeps both TensorCores busy.
        TB = _round_up(_cdiv(B8, 2), 8)
    elif G > 2 and G % 2 == 1:
        # Prefer an even number of grid steps (v7x two-TC split); keeps padding small.
        TB = _round_up(_cdiv(B8, G + 1), 8)
    G = _cdiv(B8, TB)
    return TB, G * TB


def simplenet_v2_forward(x, weights, *, batch_tile=1024):
    """x: (B, input_size) f32 -> (B,) f32."""
    B, input_size = x.shape
    w1 = weights[0]
    hidden = w1.shape[1]

    TB, B_pad = _choose_batch_tile(B, batch_tile)
    G = B_pad // TB
    if B_pad != B:
        # Pad only the ragged remainder (no full-batch pad/cast pass in the wrapper).
        x = jnp.pad(x, ((0, B_pad - B), (0, 0)))

    # Resident weights/biases: full-array blocks, constant index_map (no re-DMA across steps),
    # single-buffered (double-buffering a constant block only doubles VMEM footprint).
    def resident_spec(arr):
        return pl.BlockSpec(arr.shape, lambda i: (0, 0), pipeline_mode=pl.Buffered(1))

    weight_bytes = sum(int(w.size) * w.dtype.itemsize for w in weights)
    x_tile_bytes = 2 * TB * input_size * 4          # double-buffered f32 input tile
    out_tile_bytes = 2 * TB * 4                     # double-buffered f32 output tile
    act_bytes = 4 * TB * (4 * hidden) * 4           # activation / spill headroom
    needed = weight_bytes + x_tile_bytes + out_tile_bytes + act_bytes
    vmem_limit = int(min(max(2 * needed, 32 * 2**20), 64 * 2**20))   # valid on v5e/v6e/v7x

    flops = B_pad * (
        2 * input_size * hidden                     # linear_1
        + 32 * hidden * hidden                      # block_1 + block_2
        + 8 * hidden * hidden                       # block_3 expansion
        + 8 * hidden                                # fused block_3 output -> scalar
    )
    bytes_accessed = B_pad * input_size * 4 + weight_bytes + B_pad * 4

    out = pl.pallas_call(
        simplenet_v2_kernel,
        out_shape=jax.ShapeDtypeStruct((B_pad, 1), jnp.float32),
        grid=(G,),
        in_specs=[pl.BlockSpec((TB, input_size), lambda i: (i, 0))]
        + [resident_spec(w) for w in weights],
        out_specs=pl.BlockSpec((TB, 1), lambda i: (i, 0)),
        compiler_params=pltpu.CompilerParams(
            dimension_semantics=("parallel",),      # shard batch tiles across v7x's 2 TCs
            vmem_limit_bytes=vmem_limit,
        ),
        cost_estimate=pl.CostEstimate(
            flops=flops, transcendentals=0, bytes_accessed=bytes_accessed
        ),
    )(x, *weights)
    return out[:B, 0]                               # .squeeze(-1), padding dropped


# --------------------------------------------------------------------------------------------
# Plain-JAX reference mirroring the kernel's precision (bf16 matmul feeds, f32 accumulation,
# folded final linear).  A true f32 PyTorch SimpleNetV2 differs only by bf16 rounding.
# --------------------------------------------------------------------------------------------
def reference_forward(x, weights):
    (w1, b1, wa1, ba1, wb1, bb1, wa2, ba2, wb2, bb2, wa3, ba3, wf, bf) = weights

    def lin(h, w, b):
        return jnp.dot(h.astype(jnp.bfloat16), w, preferred_element_type=jnp.float32) + b

    h = lin(x, w1, b1)
    for wa, ba, wb, bb in ((wa1, ba1, wb1, bb1), (wa2, ba2, wb2, bb2)):
        t = jnp.maximum(lin(h, wa, ba), 0.0)
        h = lin(t, wb, bb)
    t = jnp.maximum(lin(h, wa3, ba3), 0.0)
    y = lin(t, wf, bf)
    return y[:, 0]


if __name__ == "__main__":
    key = jax.random.PRNGKey(0)
    k_param, k_x = jax.random.split(key)

    batch, input_size, hidden_size = 8, 16, 32
    params = init_params(k_param, input_size, hidden_size)
    weights = prepare_weights(params)
    x = jax.random.normal(k_x, (batch, input_size), jnp.float32)

    fwd = jax.jit(functools.partial(simplenet_v2_forward, batch_tile=1024))
    y = fwd(x, weights)
    jax.block_until_ready(y)

    y_ref = reference_forward(x, weights)
    assert y.shape == (batch,), y.shape
    assert jnp.allclose(y, y_ref, atol=1e-3, rtol=1e-3), (y, y_ref)
    print("KERNEL_OK")
</pallas_src>

<mosaic_0001>
module attributes {stable_mosaic.version = 11 : i64} {
  func.func @simplenet_v2_kernel(%arg0: i32, %arg1: memref<8x16xf32, #tpu.memory_space<vmem>>, %arg2: memref<16x32xbf16, #tpu.memory_space<vmem>>, %arg3: memref<1x32xf32, #tpu.memory_space<vmem>>, %arg4: memref<32x128xbf16, #tpu.memory_space<vmem>>, %arg5: memref<1x128xf32, #tpu.memory_space<vmem>>, %arg6: memref<128x32xbf16, #tpu.memory_space<vmem>>, %arg7: memref<1x32xf32, #tpu.memory_space<vmem>>, %arg8: memref<32x128xbf16, #tpu.memory_space<vmem>>, %arg9: memref<1x128xf32, #tpu.memory_space<vmem>>, %arg10: memref<128x32xbf16, #tpu.memory_space<vmem>>, %arg11: memref<1x32xf32, #tpu.memory_space<vmem>>, %arg12: memref<32x128xbf16, #tpu.memory_space<vmem>>, %arg13: memref<1x128xf32, #tpu.memory_space<vmem>>, %arg14: memref<128x1xbf16, #tpu.memory_space<vmem>>, %arg15: memref<1x1xf32, #tpu.memory_space<vmem>>, %arg16: memref<8x1xf32, #tpu.memory_space<vmem>>) attributes {dimension_semantics = [#tpu.dimension_semantics<parallel>], iteration_bounds = array<i64: 1>, scalar_prefetch = 0 : i64, scratch_operands = 0 : i64, tpu.core_type = #tpu.core_type<tc>, window_params = [{transform_indices = @transform_0, window_bounds = array<i64: 8, 16>}, {pipeline_mode = #tpu.pipeline_mode<synchronous>, transform_indices = @transform_1, window_bounds = array<i64: 16, 32>}, {pipeline_mode = #tpu.pipeline_mode<synchronous>, transform_indices = @transform_2, window_bounds = array<i64: 1, 32>}, {pipeline_mode = #tpu.pipeline_mode<synchronous>, transform_indices = @transform_3, window_bounds = array<i64: 32, 128>}, {pipeline_mode = #tpu.pipeline_mode<synchronous>, transform_indices = @transform_4, window_bounds = array<i64: 1, 128>}, {pipeline_mode = #tpu.pipeline_mode<synchronous>, transform_indices = @transform_5, window_bounds = array<i64: 128, 32>}, {pipeline_mode = #tpu.pipeline_mode<synchronous>, transform_indices = @transform_6, window_bounds = array<i64: 1, 32>}, {pipeline_mode = #tpu.pipeline_mode<synchronous>, transform_indices = @transform_7, window_bounds = array<i64: 32, 128>}, {pipeline_mode = #tpu.pipeline_mode<synchronous>, transform_indices = @transform_8, window_bounds = array<i64: 1, 128>}, {pipeline_mode = #tpu.pipeline_mode<synchronous>, transform_indices = @transform_9, window_bounds = array<i64: 128, 32>}, {pipeline_mode = #tpu.pipeline_mode<synchronous>, transform_indices = @transform_10, window_bounds = array<i64: 1, 32>}, {pipeline_mode = #tpu.pipeline_mode<synchronous>, transform_indices = @transform_11, window_bounds = array<i64: 32, 128>}, {pipeline_mode = #tpu.pipeline_mode<synchronous>, transform_indices = @transform_12, window_bounds = array<i64: 1, 128>}, {pipeline_mode = #tpu.pipeline_mode<synchronous>, transform_indices = @transform_13, window_bounds = array<i64: 128, 1>}, {pipeline_mode = #tpu.pipeline_mode<synchronous>, transform_indices = @transform_14, window_bounds = array<i64: 1, 1>}, {transform_indices = @transform_15, window_bounds = array<i64: 8, 1>}]} {
    %c0 = arith.constant 0 : index
    %c0_0 = arith.constant 0 : index
    %0 = vector.load %arg1[%c0, %c0_0] : memref<8x16xf32, #tpu.memory_space<vmem>>, vector<8x16xf32>
    %1 = arith.truncf %0 : vector<8x16xf32> to vector<8x16xbf16>
    %c0_1 = arith.constant 0 : index
    %c0_2 = arith.constant 0 : index
    %2 = vector.load %arg2[%c0_1, %c0_2] : memref<16x32xbf16, #tpu.memory_space<vmem>>, vector<16x32xbf16>
    %cst = arith.constant dense<0.000000e+00> : vector<8x32xf32>
    %3 = tpu.matmul %1, %2, %cst {dimension_numbers = #tpu.dot_dimension_numbers<[1], [0], [0], [1], [0, 0, 1, 1], [], []>} : vector<8x16xbf16>, vector<16x32xbf16>, vector<8x32xf32> -> vector<8x32xf32>
    %c0_3 = arith.constant 0 : index
    %c0_4 = arith.constant 0 : index
    %4 = vector.load %arg3[%c0_3, %c0_4] : memref<1x32xf32, #tpu.memory_space<vmem>>, vector<1x32xf32>
    %5 = vector.broadcast %4 : vector<1x32xf32> to vector<8x32xf32>
    %6 = arith.addf %3, %5 : vector<8x32xf32>
    %7 = arith.truncf %6 : vector<8x32xf32> to vector<8x32xbf16>
    %c0_5 = arith.constant 0 : index
    %c0_6 = arith.constant 0 : index
    %8 = vector.load %arg4[%c0_5, %c0_6] : memref<32x128xbf16, #tpu.memory_space<vmem>>, vector<32x128xbf16>
    %cst_7 = arith.constant dense<0.000000e+00> : vector<8x128xf32>
    %9 = tpu.matmul %7, %8, %cst_7 {dimension_numbers = #tpu.dot_dimension_numbers<[1], [0], [0], [1], [0, 0, 1, 1], [], []>} : vector<8x32xbf16>, vector<32x128xbf16>, vector<8x128xf32> -> vector<8x128xf32>
    %c0_8 = arith.constant 0 : index
    %c0_9 = arith.constant 0 : index
    %10 = vector.load %arg5[%c0_8, %c0_9] : memref<1x128xf32, #tpu.memory_space<vmem>>, vector<1x128xf32>
    %11 = vector.broadcast %10 : vector<1x128xf32> to vector<8x128xf32>
    %12 = arith.addf %9, %11 : vector<8x128xf32>
    %cst_10 = arith.constant 0.000000e+00 : f32
    %13 = vector.broadcast %cst_10 : f32 to vector<8x128xf32>
    %14 = arith.maximumf %12, %13 : vector<8x128xf32>
    %15 = arith.truncf %14 : vector<8x128xf32> to vector<8x128xbf16>
    %c0_11 = arith.constant 0 : index
    %c0_12 = arith.constant 0 : index
    %16 = vector.load %arg6[%c0_11, %c0_12] : memref<128x32xbf16, #tpu.memory_space<vmem>>, vector<128x32xbf16>
    %cst_13 = arith.constant dense<0.000000e+00> : vector<8x32xf32>
    %17 = tpu.matmul %15, %16, %cst_13 {dimension_numbers = #tpu.dot_dimension_numbers<[1], [0], [0], [1], [0, 0, 1, 1], [], []>} : vector<8x128xbf16>, vector<128x32xbf16>, vector<8x32xf32> -> vector<8x32xf32>
    %c0_14 = arith.constant 0 : index
    %c0_15 = arith.constant 0 : index
    %18 = vector.load %arg7[%c0_14, %c0_15] : memref<1x32xf32, #tpu.memory_space<vmem>>, vector<1x32xf32>
    %19 = vector.broadcast %18 : vector<1x32xf32> to vector<8x32xf32>
    %20 = arith.addf %17, %19 : vector<8x32xf32>
    %21 = arith.truncf %20 : vector<8x32xf32> to vector<8x32xbf16>
    %c0_16 = arith.constant 0 : index
    %c0_17 = arith.constant 0 : index
    %22 = vector.load %arg8[%c0_16, %c0_17] : memref<32x128xbf16, #tpu.memory_space<vmem>>, vector<32x128xbf16>
    %cst_18 = arith.constant dense<0.000000e+00> : vector<8x128xf32>
    %23 = tpu.matmul %21, %22, %cst_18 {dimension_numbers = #tpu.dot_dimension_numbers<[1], [0], [0], [1], [0, 0, 1, 1], [], []>} : vector<8x32xbf16>, vector<32x128xbf16>, vector<8x128xf32> -> vector<8x128xf32>
    %c0_19 = arith.constant 0 : index
    %c0_20 = arith.constant 0 : index
    %24 = vector.load %arg9[%c0_19, %c0_20] : memref<1x128xf32, #tpu.memory_space<vmem>>, vector<1x128xf32>
    %25 = vector.broadcast %24 : vector<1x128xf32> to vector<8x128xf32>
    %26 = arith.addf %23, %25 : vector<8x128xf32>
    %cst_21 = arith.constant 0.000000e+00 : f32
    %27 = vector.broadcast %cst_21 : f32 to vector<8x128xf32>
    %28 = arith.maximumf %26, %27 : vector<8x128xf32>
    %29 = arith.truncf %28 : vector<8x128xf32> to vector<8x128xbf16>
    %c0_22 = arith.constant 0 : index
    %c0_23 = arith.constant 0 : index
    %30 = vector.load %arg10[%c0_22, %c0_23] : memref<128x32xbf16, #tpu.memory_space<vmem>>, vector<128x32xbf16>
    %cst_24 = arith.constant dense<0.000000e+00> : vector<8x32xf32>
    %31 = tpu.matmul %29, %30, %cst_24 {dimension_numbers = #tpu.dot_dimension_numbers<[1], [0], [0], [1], [0, 0, 1, 1], [], []>} : vector<8x128xbf16>, vector<128x32xbf16>, vector<8x32xf32> -> vector<8x32xf32>
    %c0_25 = arith.constant 0 : index
    %c0_26 = arith.constant 0 : index
    %32 = vector.load %arg11[%c0_25, %c0_26] : memref<1x32xf32, #tpu.memory_space<vmem>>, vector<1x32xf32>
    %33 = vector.broadcast %32 : vector<1x32xf32> to vector<8x32xf32>
    %34 = arith.addf %31, %33 : vector<8x32xf32>
    %35 = arith.truncf %34 : vector<8x32xf32> to vector<8x32xbf16>
    %c0_27 = arith.constant 0 : index
    %c0_28 = arith.constant 0 : index
    %36 = vector.load %arg12[%c0_27, %c0_28] : memref<32x128xbf16, #tpu.memory_space<vmem>>, vector<32x128xbf16>
    %cst_29 = arith.constant dense<0.000000e+00> : vector<8x128xf32>
    %37 = tpu.matmul %35, %36, %cst_29 {dimension_numbers = #tpu.dot_dimension_numbers<[1], [0], [0], [1], [0, 0, 1, 1], [], []>} : vector<8x32xbf16>, vector<32x128xbf16>, vector<8x128xf32> -> vector<8x128xf32>
    %c0_30 = arith.constant 0 : index
    %c0_31 = arith.constant 0 : index
    %38 = vector.load %arg13[%c0_30, %c0_31] : memref<1x128xf32, #tpu.memory_space<vmem>>, vector<1x128xf32>
    %39 = vector.broadcast %38 : vector<1x128xf32> to vector<8x128xf32>
    %40 = arith.addf %37, %39 : vector<8x128xf32>
    %cst_32 = arith.constant 0.000000e+00 : f32
    %41 = vector.broadcast %cst_32 : f32 to vector<8x128xf32>
    %42 = arith.maximumf %40, %41 : vector<8x128xf32>
    %43 = arith.truncf %42 : vector<8x128xf32> to vector<8x128xbf16>
    %c0_33 = arith.constant 0 : index
    %c0_34 = arith.constant 0 : index
    %44 = vector.load %arg14[%c0_33, %c0_34] : memref<128x1xbf16, #tpu.memory_space<vmem>>, vector<128x1xbf16>
    %cst_35 = arith.constant dense<0.000000e+00> : vector<8x1xf32>
    %45 = tpu.matmul %43, %44, %cst_35 {dimension_numbers = #tpu.dot_dimension_numbers<[1], [0], [0], [1], [0, 0, 1, 1], [], []>} : vector<8x128xbf16>, vector<128x1xbf16>, vector<8x1xf32> -> vector<8x1xf32>
    %c0_36 = arith.constant 0 : index
    %c0_37 = arith.constant 0 : index
    %46 = vector.load %arg15[%c0_36, %c0_37] : memref<1x1xf32, #tpu.memory_space<vmem>>, vector<1x1xf32>
    %47 = vector.broadcast %46 : vector<1x1xf32> to vector<8x1xf32>
    %48 = arith.addf %45, %47 : vector<8x1xf32>
    %c0_38 = arith.constant 0 : index
    %c0_39 = arith.constant 0 : index
    %49 = vector.load %arg16[%c0_38, %c0_39] : memref<8x1xf32, #tpu.memory_space<vmem>>, vector<8x1xf32>
    tpu.vector_store %arg16[%c0_38, %c0_39], %48 {strides = array<i32>} : memref<8x1xf32, #tpu.memory_space<vmem>>, vector<8x1xf32>,
    return
  }
  func.func @transform_0(%arg0: i32) -> (i32, i32) {
    %c0_i32 = arith.constant 0 : i32
    %c0_i32_0 = arith.constant 0 : i32
    return %arg0, %c0_i32 : i32, i32
  }
  func.func @transform_1(%arg0: i32) -> (i32, i32) {
    %c0_i32 = arith.constant 0 : i32
    %c0_i32_0 = arith.constant 0 : i32
    %c0_i32_1 = arith.constant 0 : i32
    return %c0_i32, %c0_i32_0 : i32, i32
  }
  func.func @transform_2(%arg0: i32) -> (i32, i32) {
    %c0_i32 = arith.constant 0 : i32
    %c0_i32_0 = arith.constant 0 : i32
    %c0_i32_1 = arith.constant 0 : i32
    return %c0_i32, %c0_i32_0 : i32, i32
  }
  func.func @transform_3(%arg0: i32) -> (i32, i32) {
    %c0_i32 = arith.constant 0 : i32
    %c0_i32_0 = arith.constant 0 : i32
    %c0_i32_1 = arith.constant 0 : i32
    return %c0_i32, %c0_i32_0 : i32, i32
  }
  func.func @transform_4(%arg0: i32) -> (i32, i32) {
    %c0_i32 = arith.constant 0 : i32
    %c0_i32_0 = arith.constant 0 : i32
    %c0_i32_1 = arith.constant 0 : i32
    return %c0_i32, %c0_i32_0 : i32, i32
  }
  func.func @transform_5(%arg0: i32) -> (i32, i32) {
    %c0_i32 = arith.constant 0 : i32
    %c0_i32_0 = arith.constant 0 : i32
    %c0_i32_1 = arith.constant 0 : i32
    return %c0_i32, %c0_i32_0 : i32, i32
  }
  func.func @transform_6(%arg0: i32) -> (i32, i32) {
    %c0_i32 = arith.constant 0 : i32
    %c0_i32_0 = arith.constant 0 : i32
    %c0_i32_1 = arith.constant 0 : i32
    return %c0_i32, %c0_i32_0 : i32, i32
  }
  func.func @transform_7(%arg0: i32) -> (i32, i32) {
    %c0_i32 = arith.constant 0 : i32
    %c0_i32_0 = arith.constant 0 : i32
    %c0_i32_1 = arith.constant 0 : i32
    return %c0_i32, %c0_i32_0 : i32, i32
  }
  func.func @transform_8(%arg0: i32) -> (i32, i32) {
    %c0_i32 = arith.constant 0 : i32
    %c0_i32_0 = arith.constant 0 : i32
    %c0_i32_1 = arith.constant 0 : i32
    return %c0_i32, %c0_i32_0 : i32, i32
  }
  func.func @transform_9(%arg0: i32) -> (i32, i32) {
    %c0_i32 = arith.constant 0 : i32
    %c0_i32_0 = arith.constant 0 : i32
    %c0_i32_1 = arith.constant 0 : i32
    return %c0_i32, %c0_i32_0 : i32, i32
  }
  func.func @transform_10(%arg0: i32) -> (i32, i32) {
    %c0_i32 = arith.constant 0 : i32
    %c0_i32_0 = arith.constant 0 : i32
    %c0_i32_1 = arith.constant 0 : i32
    return %c0_i32, %c0_i32_0 : i32, i32
  }
  func.func @transform_11(%arg0: i32) -> (i32, i32) {
    %c0_i32 = arith.constant 0 : i32
    %c0_i32_0 = arith.constant 0 : i32
    %c0_i32_1 = arith.constant 0 : i32
    return %c0_i32, %c0_i32_0 : i32, i32
  }
  func.func @transform_12(%arg0: i32) -> (i32, i32) {
    %c0_i32 = arith.constant 0 : i32
    %c0_i32_0 = arith.constant 0 : i32
    %c0_i32_1 = arith.constant 0 : i32
    return %c0_i32, %c0_i32_0 : i32, i32
  }
  func.func @transform_13(%arg0: i32) -> (i32, i32) {
    %c0_i32 = arith.constant 0 : i32
    %c0_i32_0 = arith.constant 0 : i32
    %c0_i32_1 = arith.constant 0 : i32
    return %c0_i32, %c0_i32_0 : i32, i32
  }
  func.func @transform_14(%arg0: i32) -> (i32, i32) {
    %c0_i32 = arith.constant 0 : i32
    %c0_i32_0 = arith.constant 0 : i32
    %c0_i32_1 = arith.constant 0 : i32
    return %c0_i32, %c0_i32_0 : i32, i32
  }
  func.func @transform_15(%arg0: i32) -> (i32, i32) {
    %c0_i32 = arith.constant 0 : i32
    %c0_i32_0 = arith.constant 0 : i32
    return %arg0, %c0_i32 : i32, i32
  }
}

</mosaic_0001>

<llo_original>
// kernel: simplenet_v2_forward.1
$region0: #{simplenet_v2_forward.1}
  #allocation0 [shape = 'u32[]', space=smem, size = 0x4, offset = 0x4, fixed_abs, tag = 'smem constant byte address 0x4 - core index']
  #allocation1 [shape = 'u32[144,128]{1,0:T(1,128)}', space=vmem, size = 0x12000, scoped, tag = 'internal scratch']
  #allocation2 [shape = 'f32[1,1]{1,0:T(1,128)S(1)}', space=vmem, size = 0x200, scoped, tag = 'scoped memory for simplenet_v2_forward.1']
  %s0 = inlined_call_operand.vmem [shape: f32[8,16], index: 0, kind: input, shape index: {}]
  %s1 = inlined_call_operand.vmem [shape: bf16[16,32], index: 1, kind: input, shape index: {}]
  %s2 = inlined_call_operand.vmem [shape: f32[1,32], index: 2, kind: input, shape index: {}]
  %s3 = inlined_call_operand.vmem [shape: bf16[32,128], index: 3, kind: input, shape index: {}]
  %s4 = inlined_call_operand.vmem [shape: f32[1,128], index: 4, kind: input, shape index: {}]
  %s5 = inlined_call_operand.vmem [shape: bf16[128,32], index: 5, kind: input, shape index: {}]
  %s6 = inlined_call_operand.vmem [shape: f32[1,32], index: 6, kind: input, shape index: {}]
  %s7 = inlined_call_operand.vmem [shape: bf16[32,128], index: 7, kind: input, shape index: {}]
  %s8 = inlined_call_operand.vmem [shape: f32[1,128], index: 8, kind: input, shape index: {}]
  %s9 = inlined_call_operand.vmem [shape: bf16[128,32], index: 9, kind: input, shape index: {}]
  %s10 = inlined_call_operand.vmem [shape: f32[1,32], index: 10, kind: input, shape index: {}]
  %s11 = inlined_call_operand.vmem [shape: bf16[32,128], index: 11, kind: input, shape index: {}]
  %s12 = inlined_call_operand.vmem [shape: f32[1,128], index: 12, kind: input, shape index: {}]
  %s13 = inlined_call_operand.vmem [shape: bf16[128,1], index: 13, kind: input, shape index: {}]
  %s14 = inlined_call_operand.<no memory space> [shape: f32[1,1], index: 14, kind: input, shape index: {}]
  %s15 = inlined_call_operand.vmem [shape: f32[8,1], index: 15, kind: output, shape index: {}]
  %s16 = sld [smem:[#allocation0]]
  $region70: #{simplenet_v2_forward.1} parent=0
    _
  %s18 = ssub.s32 1, %s16
  %s19 = scalar_select 0, %s18, %s16
  %v20 = vstv %s14
  %21 = vst [vmem:[#allocation2] sm:$0x1] %v20
  // Predicated region
  $region2: #{simplenet_v2_forward.1} parent=0 // pred_check
    _
  $region3: #{simplenet_v2_forward.1} parent=0 // pred_check_branch
    %23 = sbr.rel (0) target = $region5
  $region4: #{simplenet_v2_forward.1} parent=0 // pred_region
    _
  $region5: #{simplenet_v2_forward.1} parent=0 // pred_fallthru
    _
  // Predicated region
  $region6: #{simplenet_v2_forward.1} parent=0 // pred_check
    _
  $region7: #{simplenet_v2_forward.1} parent=0 // pred_check_branch
    %25 = sbr.rel (0) target = $region9
  $region8: #{simplenet_v2_forward.1} parent=0 // pred_region
    _
  $region9: #{simplenet_v2_forward.1} parent=0 // pred_fallthru
    _
  // Predicated region
  $region10: #{simplenet_v2_forward.1} parent=0 // pred_check
    _
  $region11: #{simplenet_v2_forward.1} parent=0 // pred_check_branch
    %27 = sbr.rel (0) target = $region13
  $region12: #{simplenet_v2_forward.1} parent=0 // pred_region
    _
  $region13: #{simplenet_v2_forward.1} parent=0 // pred_fallthru
    _
  // Predicated region
  $region14: #{simplenet_v2_forward.1} parent=0 // pred_check
    _
  $region15: #{simplenet_v2_forward.1} parent=0 // pred_check_branch
    %29 = sbr.rel (0) target = $region17
  $region16: #{simplenet_v2_forward.1} parent=0 // pred_region
    _
  $region17: #{simplenet_v2_forward.1} parent=0 // pred_fallthru
    _
  // Predicated region
  $region18: #{simplenet_v2_forward.1} parent=0 // pred_check
    _
  $region19: #{simplenet_v2_forward.1} parent=0 // pred_check_branch
    %31 = sbr.rel (0) target = $region21
  $region20: #{simplenet_v2_forward.1} parent=0 // pred_region
    _
  $region21: #{simplenet_v2_forward.1} parent=0 // pred_fallthru
    _
  // Predicated region
  $region22: #{simplenet_v2_forward.1} parent=0 // pred_check
    _
  $region23: #{simplenet_v2_forward.1} parent=0 // pred_check_branch
    %33 = sbr.rel (0) target = $region25
  $region24: #{simplenet_v2_forward.1} parent=0 // pred_region
    _
  $region25: #{simplenet_v2_forward.1} parent=0 // pred_fallthru
    _
  // Predicated region
  $region26: #{simplenet_v2_forward.1} parent=0 // pred_check
    _
  $region27: #{simplenet_v2_forward.1} parent=0 // pred_check_branch
    %35 = sbr.rel (0) target = $region29
  $region28: #{simplenet_v2_forward.1} parent=0 // pred_region
    _
  $region29: #{simplenet_v2_forward.1} parent=0 // pred_fallthru
    _
  // Predicated region
  $region30: #{simplenet_v2_forward.1} parent=0 // pred_check
    _
  $region31: #{simplenet_v2_forward.1} parent=0 // pred_check_branch
    %37 = sbr.rel (0) target = $region33
  $region32: #{simplenet_v2_forward.1} parent=0 // pred_region
    _
  $region33: #{simplenet_v2_forward.1} parent=0 // pred_fallthru
    _
  // Predicated region
  $region34: #{simplenet_v2_forward.1} parent=0 // pred_check
    _
  $region35: #{simplenet_v2_forward.1} parent=0 // pred_check_branch
    %39 = sbr.rel (0) target = $region37
  $region36: #{simplenet_v2_forward.1} parent=0 // pred_region
    _
  $region37: #{simplenet_v2_forward.1} parent=0 // pred_fallthru
    _
  // Predicated region
  $region38: #{simplenet_v2_forward.1} parent=0 // pred_check
    _
  $region39: #{simplenet_v2_forward.1} parent=0 // pred_check_branch
    %41 = sbr.rel (0) target = $region41
  $region40: #{simplenet_v2_forward.1} parent=0 // pred_region
    _
  $region41: #{simplenet_v2_forward.1} parent=0 // pred_fallthru
    _
  // Predicated region
  $region42: #{simplenet_v2_forward.1} parent=0 // pred_check
    _
  $region43: #{simplenet_v2_forward.1} parent=0 // pred_check_branch
    %43 = sbr.rel (0) target = $region45
  $region44: #{simplenet_v2_forward.1} parent=0 // pred_region
    _
  $region45: #{simplenet_v2_forward.1} parent=0 // pred_fallthru
    _
  // Predicated region
  $region46: #{simplenet_v2_forward.1} parent=0 // pred_check
    _
  $region47: #{simplenet_v2_forward.1} parent=0 // pred_check_branch
    %45 = sbr.rel (0) target = $region49
  $region48: #{simplenet_v2_forward.1} parent=0 // pred_region
    _
  $region49: #{simplenet_v2_forward.1} parent=0 // pred_fallthru
    _
  // Predicated region
  $region50: #{simplenet_v2_forward.1} parent=0 // pred_check
    _
  $region51: #{simplenet_v2_forward.1} parent=0 // pred_check_branch
    %47 = sbr.rel (0) target = $region53
  $region52: #{simplenet_v2_forward.1} parent=0 // pred_region
    _
  $region53: #{simplenet_v2_forward.1} parent=0 // pred_fallthru
    _
  // Predicated region
  $region54: #{simplenet_v2_forward.1} parent=0 // pred_check
    _
  $region55: #{simplenet_v2_forward.1} parent=0 // pred_check_branch
    %49 = sbr.rel (0) target = $region57
  $region56: #{simplenet_v2_forward.1} parent=0 // pred_region
    _
  $region57: #{simplenet_v2_forward.1} parent=0 // pred_fallthru
    _
  // Predicated region
  $region58: #{simplenet_v2_forward.1} parent=0 // pred_check
    _
  $region59: #{simplenet_v2_forward.1} parent=0 // pred_check_branch
    %51 = sbr.rel (0) target = $region61
  $region60: #{simplenet_v2_forward.1} parent=0 // pred_region
    _
  $region61: #{simplenet_v2_forward.1} parent=0 // pred_fallthru
    _
  %v53 = vld [vmem:[%s0] sm:$0xff]
  %v54 = vpack.c.bf16 %v53, %v53
  %v55 = vld [vmem:[%s1] sm:$0xf]
  %v56 = vld [vmem:[%s1 + $0x4] sm:$0xf]
  %v57 = vld [vmem:[%s2] sm:$0x1]
  %v59 = vlaneseq
  %v60 = vshrl.u32 %v59, 7
  %v61 = vsub.s32 0, %v60
  %v62 = vrot.slane %v57, %v61
  %v66 = vunpack.c.l.b16 %v55
  %v67 = vunpack.c.l.b16 %v56
  %v68 = vpack.c.b16 %v67, %v66
  %vm70 = vcmask 130048
  %v72 = vsel %vm70, %v54, 0
  %74 = vmatprep.subr.bf16.mxu0 0
  %75 = vmatpush1.bf16.msra.mxu0 0
  %76 = vmatprep.subr.bf16.mxu0 0
  %77 = vmatpush1.bf16.msra.mxu0 0
  %78 = vmatprep.subr.bf16.mxu0 0
  %79 = vmatpush1.bf16.msra.mxu0 0
  %80 = vmatprep.subr.bf16.mxu0 0
  %81 = vmatpush1.bf16.msra.mxu0 0
  %82 = vmatprep.subr.bf16.mxu0 0
  %83 = vmatpush1.bf16.msra.mxu0 0
  %84 = vmatprep.subr.bf16.mxu0 0
  %85 = vmatpush1.bf16.msra.mxu0 0
  %86 = vmatprep.subr.bf16.mxu0 0
  %87 = vmatpush1.bf16.msra.mxu0 0
  %88 = vmatprep.subr.bf16.mxu0 0
  %89 = vmatpush1.bf16.msra.mxu0 %v68
  %90 = vmatprep.subr.bf16.mxu0 0
  %91 = vmatpush2.bf16.msra.mxu0 0
  %92 = vmatprep.subr.bf16.mxu0 0
  %93 = vmatpush2.bf16.msra.mxu0 0
  %94 = vmatprep.subr.bf16.mxu0 0
  %95 = vmatpush2.bf16.msra.mxu0 0
  %96 = vmatprep.subr.bf16.mxu0 0
  %97 = vmatpush2.bf16.msra.mxu0 0
  %98 = vmatprep.subr.bf16.mxu0 0
  %99 = vmatpush2.bf16.msra.mxu0 0
  %100 = vmatprep.subr.bf16.mxu0 0
  %101 = vmatpush2.bf16.msra.mxu0 0
  %102 = vmatprep.subr.bf16.mxu0 0
  %103 = vmatpush2.bf16.msra.mxu0 0
  %104 = vmatprep.subr.bf16.mxu0 0
  %105 = vmatpush2.bf16.msra.mxu0 0
  %106 = vmatprep.mubr.bf16.mxu0 0
  %107 = vmatmul.mubr.bf16.gmra.mxu0 %v72
  %v108 = vpop.f32.mrf.mxu0
  %v109 = vadd.f32 %v62, %v108
  %v110 = vpop.f32.mrf.mxu0
  %v111 = vpop.f32.mrf.mxu0
  %v112 = vpop.f32.mrf.mxu0
  %113 = vdwg.mxu0
  %v114 = vpack.c.bf16 %v109, %v109
  %v115 = vld [vmem:[%s3] sm:$0xf]
  %v116 = vld [vmem:[%s3 + $0x4] sm:$0xf]
  %v117 = vld [vmem:[%s3 + $0x8] sm:$0xf]
  %v118 = vld [vmem:[%s3 + $0xc] sm:$0xf]
  %v119 = vld [vmem:[%s4] sm:$0x1]
  %v121 = vlaneseq
  %v122 = vshrl.u32 %v121, 7
  %v123 = vsub.s32 0, %v122
  %v124 = vrot.slane %v119, %v123
  %v130 = vunpack.c.l.b16 %v115
  %v131 = vunpack.c.l.b16 %v116
  %v132 = vunpack.c.l.b16 %v117
  %v133 = vunpack.c.l.b16 %v118
  %v134 = vpack.c.b16 %v131, %v130
  %v135 = vpack.c.b16 %v133, %v132
  %vm138 = vcmask 261120
  %v140 = vsel %vm138, %v114, 0
  %142 = vmatprep.subr.bf16.mxu0 0
  %143 = vmatpush1.bf16.msra.mxu0 0
  %144 = vmatprep.subr.bf16.mxu0 0
  %145 = vmatpush1.bf16.msra.mxu0 0
  %146 = vmatprep.subr.bf16.mxu0 0
  %147 = vmatpush1.bf16.msra.mxu0 0
  %148 = vmatprep.subr.bf16.mxu0 0
  %149 = vmatpush1.bf16.msra.mxu0 0
  %150 = vmatprep.subr.bf16.mxu0 0
  %151 = vmatpush1.bf16.msra.mxu0 0
  %152 = vmatprep.subr.bf16.mxu0 0
  %153 = vmatpush1.bf16.msra.mxu0 0
  %154 = vmatprep.subr.bf16.mxu0 0
  %155 = vmatpush1.bf16.msra.mxu0 %v135
  %156 = vmatprep.subr.bf16.mxu0 0
  %157 = vmatpush1.bf16.msra.mxu0 %v134
  %158 = vmatprep.subr.bf16.mxu0 0
  %159 = vmatpush2.bf16.msra.mxu0 0
  %160 = vmatprep.subr.bf16.mxu0 0
  %161 = vmatpush2.bf16.msra.mxu0 0
  %162 = vmatprep.subr.bf16.mxu0 0
  %163 = vmatpush2.bf16.msra.mxu0 0
  %164 = vmatprep.subr.bf16.mxu0 0
  %165 = vmatpush2.bf16.msra.mxu0 0
  %166 = vmatprep.subr.bf16.mxu0 0
  %167 = vmatpush2.bf16.msra.mxu0 0
  %168 = vmatprep.subr.bf16.mxu0 0
  %169 = vmatpush2.bf16.msra.mxu0 0
  %170 = vmatprep.subr.bf16.mxu0 0
  %171 = vmatpush2.bf16.msra.mxu0 0
  %172 = vmatprep.subr.bf16.mxu0 0
  %173 = vmatpush2.bf16.msra.mxu0 0
  %174 = vmatprep.mubr.bf16.mxu0 0
  %175 = vmatmul.mubr.bf16.gmra.mxu0 %v140
  %v176 = vpop.f32.mrf.mxu0
  %v177 = vadd.f32 %v124, %v176
  %v178 = vpop.f32.mrf.mxu0
  %v179 = vpop.f32.mrf.mxu0
  %v180 = vpop.f32.mrf.mxu0
  %181 = vdwg.mxu0
  %v182 = vmax.f32 %v177, 0.0
  %v183 = vpack.c.bf16 %v182, %v182
  %v184 = vld [vmem:[%s5] sm:$0xf]
  %v185 = vld [vmem:[%s5 + $0x4] sm:$0xf]
  %v186 = vld [vmem:[%s5 + $0x8] sm:$0xf]
  %v187 = vld [vmem:[%s5 + $0xc] sm:$0xf]
  %v188 = vld [vmem:[%s5 + $0x10] sm:$0xf]
  %v189 = vld [vmem:[%s5 + $0x14] sm:$0xf]
  %v190 = vld [vmem:[%s5 + $0x18] sm:$0xf]
  %v191 = vld [vmem:[%s5 + $0x1c] sm:$0xf]
  %v192 = vld [vmem:[%s5 + $0x20] sm:$0xf]
  %v193 = vld [vmem:[%s5 + $0x24] sm:$0xf]
  %v194 = vld [vmem:[%s5 + $0x28] sm:$0xf]
  %v195 = vld [vmem:[%s5 + $0x2c] sm:$0xf]
  %v196 = vld [vmem:[%s5 + $0x30] sm:$0xf]
  %v197 = vld [vmem:[%s5 + $0x34] sm:$0xf]
  %v198 = vld [vmem:[%s5 + $0x38] sm:$0xf]
  %v199 = vld [vmem:[%s5 + $0x3c] sm:$0xf]
  %v200 = vld [vmem:[%s6] sm:$0x1]
  %v202 = vlaneseq
  %v203 = vshrl.u32 %v202, 7
  %v204 = vsub.s32 0, %v203
  %v205 = vrot.slane %v200, %v204
  %v223 = vunpack.c.l.b16 %v184
  %v224 = vunpack.c.l.b16 %v185
  %v225 = vunpack.c.l.b16 %v186
  %v226 = vunpack.c.l.b16 %v187
  %v227 = vunpack.c.l.b16 %v188
  %v228 = vunpack.c.l.b16 %v189
  %v229 = vunpack.c.l.b16 %v190
  %v230 = vunpack.c.l.b16 %v191
  %v231 = vunpack.c.l.b16 %v192
  %v232 = vunpack.c.l.b16 %v193
  %v233 = vunpack.c.l.b16 %v194
  %v234 = vunpack.c.l.b16 %v195
  %v235 = vunpack.c.l.b16 %v196
  %v236 = vunpack.c.l.b16 %v197
  %v237 = vunpack.c.l.b16 %v198
  %v238 = vunpack.c.l.b16 %v199
  %v239 = vpack.c.b16 %v224, %v223
  %v240 = vpack.c.b16 %v226, %v225
  %v241 = vpack.c.b16 %v228, %v227
  %v242 = vpack.c.b16 %v230, %v229
  %v243 = vpack.c.b16 %v232, %v231
  %v244 = vpack.c.b16 %v234, %v233
  %v245 = vpack.c.b16 %v236, %v235
  %v246 = vpack.c.b16 %v238, %v237
  %255 = vmatprep.subr.bf16.mxu0 0
  %256 = vmatpush1.bf16.msra.mxu0 %v246
  %257 = vmatprep.subr.bf16.mxu0 0
  %258 = vmatpush1.bf16.msra.mxu0 %v245
  %259 = vmatprep.subr.bf16.mxu0 0
  %260 = vmatpush1.bf16.msra.mxu0 %v244
  %261 = vmatprep.subr.bf16.mxu0 0
  %262 = vmatpush1.bf16.msra.mxu0 %v243
  %263 = vmatprep.subr.bf16.mxu0 0
  %264 = vmatpush1.bf16.msra.mxu0 %v242
  %265 = vmatprep.subr.bf16.mxu0 0
  %266 = vmatpush1.bf16.msra.mxu0 %v241
  %267 = vmatprep.subr.bf16.mxu0 0
  %268 = vmatpush1.bf16.msra.mxu0 %v240
  %269 = vmatprep.subr.bf16.mxu0 0
  %270 = vmatpush1.bf16.msra.mxu0 %v239
  %271 = vmatprep.subr.bf16.mxu0 0
  %272 = vmatpush2.bf16.msra.mxu0 0
  %273 = vmatprep.subr.bf16.mxu0 0
  %274 = vmatpush2.bf16.msra.mxu0 0
  %275 = vmatprep.subr.bf16.mxu0 0
  %276 = vmatpush2.bf16.msra.mxu0 0
  %277 = vmatprep.subr.bf16.mxu0 0
  %278 = vmatpush2.bf16.msra.mxu0 0
  %279 = vmatprep.subr.bf16.mxu0 0
  %280 = vmatpush2.bf16.msra.mxu0 0
  %281 = vmatprep.subr.bf16.mxu0 0
  %282 = vmatpush2.bf16.msra.mxu0 0
  %283 = vmatprep.subr.bf16.mxu0 0
  %284 = vmatpush2.bf16.msra.mxu0 0
  %285 = vmatprep.subr.bf16.mxu0 0
  %286 = vmatpush2.bf16.msra.mxu0 0
  %287 = vmatprep.mubr.bf16.mxu0 0
  %288 = vmatmul.mubr.bf16.gmra.mxu0 %v183
  %v289 = vpop.f32.mrf.mxu0
  %v290 = vadd.f32 %v205, %v289
  %v291 = vpop.f32.mrf.mxu0
  %v292 = vpop.f32.mrf.mxu0
  %v293 = vpop.f32.mrf.mxu0
  %294 = vdwg.mxu0
  %v295 = vpack.c.bf16 %v290, %v290
  %v296 = vld [vmem:[%s7] sm:$0xf]
  %v297 = vld [vmem:[%s7 + $0x4] sm:$0xf]
  %v298 = vld [vmem:[%s7 + $0x8] sm:$0xf]
  %v299 = vld [vmem:[%s7 + $0xc] sm:$0xf]
  %v300 = vld [vmem:[%s8] sm:$0x1]
  %v302 = vlaneseq
  %v303 = vshrl.u32 %v302, 7
  %v304 = vsub.s32 0, %v303
  %v305 = vrot.slane %v300, %v304
  %v311 = vunpack.c.l.b16 %v296
  %v312 = vunpack.c.l.b16 %v297
  %v313 = vunpack.c.l.b16 %v298
  %v314 = vunpack.c.l.b16 %v299
  %v315 = vpack.c.b16 %v312, %v311
  %v316 = vpack.c.b16 %v314, %v313
  %v320 = vsel %vm138, %v295, 0
  %322 = vmatprep.subr.bf16.mxu0 0
  %323 = vmatpush1.bf16.msra.mxu0 0
  %324 = vmatprep.subr.bf16.mxu0 0
  %325 = vmatpush1.bf16.msra.mxu0 0
  %326 = vmatprep.subr.bf16.mxu0 0
  %327 = vmatpush1.bf16.msra.mxu0 0
  %328 = vmatprep.subr.bf16.mxu0 0
  %329 = vmatpush1.bf16.msra.mxu0 0
  %330 = vmatprep.subr.bf16.mxu0 0
  %331 = vmatpush1.bf16.msra.mxu0 0
  %332 = vmatprep.subr.bf16.mxu0 0
  %333 = vmatpush1.bf16.msra.mxu0 0
  %334 = vmatprep.subr.bf16.mxu0 0
  %335 = vmatpush1.bf16.msra.mxu0 %v316
  %336 = vmatprep.subr.bf16.mxu0 0
  %337 = vmatpush1.bf16.msra.mxu0 %v315
  %338 = vmatprep.subr.bf16.mxu0 0
  %339 = vmatpush2.bf16.msra.mxu0 0
  %340 = vmatprep.subr.bf16.mxu0 0
  %341 = vmatpush2.bf16.msra.mxu0 0
  %342 = vmatprep.subr.bf16.mxu0 0
  %343 = vmatpush2.bf16.msra.mxu0 0
  %344 = vmatprep.subr.bf16.mxu0 0
  %345 = vmatpush2.bf16.msra.mxu0 0
  %346 = vmatprep.subr.bf16.mxu0 0
  %347 = vmatpush2.bf16.msra.mxu0 0
  %348 = vmatprep.subr.bf16.mxu0 0
  %349 = vmatpush2.bf16.msra.mxu0 0
  %350 = vmatprep.subr.bf16.mxu0 0
  %351 = vmatpush2.bf16.msra.mxu0 0
  %352 = vmatprep.subr.bf16.mxu0 0
  %353 = vmatpush2.bf16.msra.mxu0 0
  %354 = vmatprep.mubr.bf16.mxu0 0
  %355 = vmatmul.mubr.bf16.gmra.mxu0 %v320
  %v356 = vpop.f32.mrf.mxu0
  %v357 = vadd.f32 %v305, %v356
  %v358 = vpop.f32.mrf.mxu0
  %v359 = vpop.f32.mrf.mxu0
  %v360 = vpop.f32.mrf.mxu0
  %361 = vdwg.mxu0
  %v362 = vmax.f32 %v357, 0.0
  %v363 = vpack.c.bf16 %v362, %v362
  %v364 = vld [vmem:[%s9] sm:$0xf]
  %v365 = vld [vmem:[%s9 + $0x4] sm:$0xf]
  %v366 = vld [vmem:[%s9 + $0x8] sm:$0xf]
  %v367 = vld [vmem:[%s9 + $0xc] sm:$0xf]
  %v368 = vld [vmem:[%s9 + $0x10] sm:$0xf]
  %v369 = vld [vmem:[%s9 + $0x14] sm:$0xf]
  %v370 = vld [vmem:[%s9 + $0x18] sm:$0xf]
  %v371 = vld [vmem:[%s9 + $0x1c] sm:$0xf]
  %v372 = vld [vmem:[%s9 + $0x20] sm:$0xf]
  %v373 = vld [vmem:[%s9 + $0x24] sm:$0xf]
  %v374 = vld [vmem:[%s9 + $0x28] sm:$0xf]
  %v375 = vld [vmem:[%s9 + $0x2c] sm:$0xf]
  %v376 = vld [vmem:[%s9 + $0x30] sm:$0xf]
  %v377 = vld [vmem:[%s9 + $0x34] sm:$0xf]
  %v378 = vld [vmem:[%s9 + $0x38] sm:$0xf]
  %v379 = vld [vmem:[%s9 + $0x3c] sm:$0xf]
  %v380 = vld [vmem:[%s10] sm:$0x1]
  %v382 = vlaneseq
  %v383 = vshrl.u32 %v382, 7
  %v384 = vsub.s32 0, %v383
  %v385 = vrot.slane %v380, %v384
  %v403 = vunpack.c.l.b16 %v364
  %v404 = vunpack.c.l.b16 %v365
  %v405 = vunpack.c.l.b16 %v366
  %v406 = vunpack.c.l.b16 %v367
  %v407 = vunpack.c.l.b16 %v368
  %v408 = vunpack.c.l.b16 %v369
  %v409 = vunpack.c.l.b16 %v370
  %v410 = vunpack.c.l.b16 %v371
  %v411 = vunpack.c.l.b16 %v372
  %v412 = vunpack.c.l.b16 %v373
  %v413 = vunpack.c.l.b16 %v374
  %v414 = vunpack.c.l.b16 %v375
  %v415 = vunpack.c.l.b16 %v376
  %v416 = vunpack.c.l.b16 %v377
  %v417 = vunpack.c.l.b16 %v378
  %v418 = vunpack.c.l.b16 %v379
  %v419 = vpack.c.b16 %v404, %v403
  %v420 = vpack.c.b16 %v406, %v405
  %v421 = vpack.c.b16 %v408, %v407
  %v422 = vpack.c.b16 %v410, %v409
  %v423 = vpack.c.b16 %v412, %v411
  %v424 = vpack.c.b16 %v414, %v413
  %v425 = vpack.c.b16 %v416, %v415
  %v426 = vpack.c.b16 %v418, %v417
  %435 = vmatprep.subr.bf16.mxu0 0
  %436 = vmatpush1.bf16.msra.mxu0 %v426
  %437 = vmatprep.subr.bf16.mxu0 0
  %438 = vmatpush1.bf16.msra.mxu0 %v425
  %439 = vmatprep.subr.bf16.mxu0 0
  %440 = vmatpush1.bf16.msra.mxu0 %v424
  %441 = vmatprep.subr.bf16.mxu0 0
  %442 = vmatpush1.bf16.msra.mxu0 %v423
  %443 = vmatprep.subr.bf16.mxu0 0
  %444 = vmatpush1.bf16.msra.mxu0 %v422
  %445 = vmatprep.subr.bf16.mxu0 0
  %446 = vmatpush1.bf16.msra.mxu0 %v421
  %447 = vmatprep.subr.bf16.mxu0 0
  %448 = vmatpush1.bf16.msra.mxu0 %v420
  %449 = vmatprep.subr.bf16.mxu0 0
  %450 = vmatpush1.bf16.msra.mxu0 %v419
  %451 = vmatprep.subr.bf16.mxu0 0
  %452 = vmatpush2.bf16.msra.mxu0 0
  %453 = vmatprep.subr.bf16.mxu0 0
  %454 = vmatpush2.bf16.msra.mxu0 0
  %455 = vmatprep.subr.bf16.mxu0 0
  %456 = vmatpush2.bf16.msra.mxu0 0
  %457 = vmatprep.subr.bf16.mxu0 0
  %458 = vmatpush2.bf16.msra.mxu0 0
  %459 = vmatprep.subr.bf16.mxu0 0
  %460 = vmatpush2.bf16.msra.mxu0 0
  %461 = vmatprep.subr.bf16.mxu0 0
  %462 = vmatpush2.bf16.msra.mxu0 0
  %463 = vmatprep.subr.bf16.mxu0 0
  %464 = vmatpush2.bf16.msra.mxu0 0
  %465 = vmatprep.subr.bf16.mxu0 0
  %466 = vmatpush2.bf16.msra.mxu0 0
  %467 = vmatprep.mubr.bf16.mxu0 0
  %468 = vmatmul.mubr.bf16.gmra.mxu0 %v363
  %v469 = vpop.f32.mrf.mxu0
  %v470 = vadd.f32 %v385, %v469
  %v471 = vpop.f32.mrf.mxu0
  %v472 = vpop.f32.mrf.mxu0
  %v473 = vpop.f32.mrf.mxu0
  %474 = vdwg.mxu0
  %v475 = vpack.c.bf16 %v470, %v470
  %v476 = vld [vmem:[%s11] sm:$0xf]
  %v477 = vld [vmem:[%s11 + $0x4] sm:$0xf]
  %v478 = vld [vmem:[%s11 + $0x8] sm:$0xf]
  %v479 = vld [vmem:[%s11 + $0xc] sm:$0xf]
  %v480 = vld [vmem:[%s12] sm:$0x1]
  %v482 = vlaneseq
  %v483 = vshrl.u32 %v482, 7
  %v484 = vsub.s32 0, %v483
  %v485 = vrot.slane %v480, %v484
  %v491 = vunpack.c.l.b16 %v476
  %v492 = vunpack.c.l.b16 %v477
  %v493 = vunpack.c.l.b16 %v478
  %v494 = vunpack.c.l.b16 %v479
  %v495 = vpack.c.b16 %v492, %v491
  %v496 = vpack.c.b16 %v494, %v493
  %v500 = vsel %vm138, %v475, 0
  %502 = vmatprep.subr.bf16.mxu0 0
  %503 = vmatpush1.bf16.msra.mxu0 0
  %504 = vmatprep.subr.bf16.mxu0 0
  %505 = vmatpush1.bf16.msra.mxu0 0
  %506 = vmatprep.subr.bf16.mxu0 0
  %507 = vmatpush1.bf16.msra.mxu0 0
  %508 = vmatprep.subr.bf16.mxu0 0
  %509 = vmatpush1.bf16.msra.mxu0 0
  %510 = vmatprep.subr.bf16.mxu0 0
  %511 = vmatpush1.bf16.msra.mxu0 0
  %512 = vmatprep.subr.bf16.mxu0 0
  %513 = vmatpush1.bf16.msra.mxu0 0
  %514 = vmatprep.subr.bf16.mxu0 0
  %515 = vmatpush1.bf16.msra.mxu0 %v496
  %516 = vmatprep.subr.bf16.mxu0 0
  %517 = vmatpush1.bf16.msra.mxu0 %v495
  %518 = vmatprep.subr.bf16.mxu0 0
  %519 = vmatpush2.bf16.msra.mxu0 0
  %520 = vmatprep.subr.bf16.mxu0 0
  %521 = vmatpush2.bf16.msra.mxu0 0
  %522 = vmatprep.subr.bf16.mxu0 0
  %523 = vmatpush2.bf16.msra.mxu0 0
  %524 = vmatprep.subr.bf16.mxu0 0
  %525 = vmatpush2.bf16.msra.mxu0 0
  %526 = vmatprep.subr.bf16.mxu0 0
  %527 = vmatpush2.bf16.msra.mxu0 0
  %528 = vmatprep.subr.bf16.mxu0 0
  %529 = vmatpush2.bf16.msra.mxu0 0
  %530 = vmatprep.subr.bf16.mxu0 0
  %531 = vmatpush2.bf16.msra.mxu0 0
  %532 = vmatprep.subr.bf16.mxu0 0
  %533 = vmatpush2.bf16.msra.mxu0 0
  %534 = vmatprep.mubr.bf16.mxu0 0
  %535 = vmatmul.mubr.bf16.gmra.mxu0 %v500
  %v536 = vpop.f32.mrf.mxu0
  %v537 = vadd.f32 %v485, %v536
  %v538 = vpop.f32.mrf.mxu0
  %v539 = vpop.f32.mrf.mxu0
  %v540 = vpop.f32.mrf.mxu0
  %541 = vdwg.mxu0
  %v542 = vmax.f32 %v537, 0.0
  %v543 = vpack.c.bf16 %v542, %v542
  %v544 = vld [vmem:[%s13] sm:$0xf]
  %v545 = vld [vmem:[%s13 + $0x4] sm:$0xf]
  %v546 = vld [vmem:[%s13 + $0x8] sm:$0xf]
  %v547 = vld [vmem:[%s13 + $0xc] sm:$0xf]
  %v548 = vld [vmem:[%s13 + $0x10] sm:$0xf]
  %v549 = vld [vmem:[%s13 + $0x14] sm:$0xf]
  %v550 = vld [vmem:[%s13 + $0x18] sm:$0xf]
  %v551 = vld [vmem:[%s13 + $0x1c] sm:$0xf]
  %v552 = vld [vmem:[%s13 + $0x20] sm:$0xf]
  %v553 = vld [vmem:[%s13 + $0x24] sm:$0xf]
  %v554 = vld [vmem:[%s13 + $0x28] sm:$0xf]
  %v555 = vld [vmem:[%s13 + $0x2c] sm:$0xf]
  %v556 = vld [vmem:[%s13 + $0x30] sm:$0xf]
  %v557 = vld [vmem:[%s13 + $0x34] sm:$0xf]
  %v558 = vld [vmem:[%s13 + $0x38] sm:$0xf]
  %v559 = vld [vmem:[%s13 + $0x3c] sm:$0xf]
  %v560 = vld [vmem:[#allocation2] sm:$0x1]
  %v562 = vlaneseq
  %v563 = vshrl.u32 %v562, 7
  %v564 = vsub.s32 0, %v563
  %v565 = vrot.slane %v560, %v564
  %v583 = vunpack.c.l.b16 %v544
  %v584 = vunpack.c.l.b16 %v545
  %v585 = vunpack.c.l.b16 %v546
  %v586 = vunpack.c.l.b16 %v547
  %v587 = vunpack.c.l.b16 %v548
  %v588 = vunpack.c.l.b16 %v549
  %v589 = vunpack.c.l.b16 %v550
  %v590 = vunpack.c.l.b16 %v551
  %v591 = vunpack.c.l.b16 %v552
  %v592 = vunpack.c.l.b16 %v553
  %v593 = vunpack.c.l.b16 %v554
  %v594 = vunpack.c.l.b16 %v555
  %v595 = vunpack.c.l.b16 %v556
  %v596 = vunpack.c.l.b16 %v557
  %v597 = vunpack.c.l.b16 %v558
  %v598 = vunpack.c.l.b16 %v559
  %v599 = vpack.c.b16 %v584, %v583
  %v600 = vpack.c.b16 %v586, %v585
  %v601 = vpack.c.b16 %v588, %v587
  %v602 = vpack.c.b16 %v590, %v589
  %v603 = vpack.c.b16 %v592, %v591
  %v604 = vpack.c.b16 %v594, %v593
  %v605 = vpack.c.b16 %v596, %v595
  %v606 = vpack.c.b16 %v598, %v597
  %615 = vmatprep.subr.bf16.mxu0 0
  %616 = vmatpush1.bf16.msra.mxu0 %v606
  %617 = vmatprep.subr.bf16.mxu0 0
  %618 = vmatpush1.bf16.msra.mxu0 %v605
  %619 = vmatprep.subr.bf16.mxu0 0
  %620 = vmatpush1.bf16.msra.mxu0 %v604
  %621 = vmatprep.subr.bf16.mxu0 0
  %622 = vmatpush1.bf16.msra.mxu0 %v603
  %623 = vmatprep.subr.bf16.mxu0 0
  %624 = vmatpush1.bf16.msra.mxu0 %v602
  %625 = vmatprep.subr.bf16.mxu0 0
  %626 = vmatpush1.bf16.msra.mxu0 %v601
  %627 = vmatprep.subr.bf16.mxu0 0
  %628 = vmatpush1.bf16.msra.mxu0 %v600
  %629 = vmatprep.subr.bf16.mxu0 0
  %630 = vmatpush1.bf16.msra.mxu0 %v599
  %631 = vmatprep.subr.bf16.mxu0 0
  %632 = vmatpush2.bf16.msra.mxu0 0
  %633 = vmatprep.subr.bf16.mxu0 0
  %634 = vmatpush2.bf16.msra.mxu0 0
  %635 = vmatprep.subr.bf16.mxu0 0
  %636 = vmatpush2.bf16.msra.mxu0 0
  %637 = vmatprep.subr.bf16.mxu0 0
  %638 = vmatpush2.bf16.msra.mxu0 0
  %639 = vmatprep.subr.bf16.mxu0 0
  %640 = vmatpush2.bf16.msra.mxu0 0
  %641 = vmatprep.subr.bf16.mxu0 0
  %642 = vmatpush2.bf16.msra.mxu0 0
  %643 = vmatprep.subr.bf16.mxu0 0
  %644 = vmatpush2.bf16.msra.mxu0 0
  %645 = vmatprep.subr.bf16.mxu0 0
  %646 = vmatpush2.bf16.msra.mxu0 0
  %647 = vmatprep.mubr.bf16.mxu0 0
  %648 = vmatmul.mubr.bf16.gmra.mxu0 %v543
  %v649 = vpop.f32.mrf.mxu0
  %v650 = vadd.f32 %v565, %v649
  %v651 = vpop.f32.mrf.mxu0
  %v652 = vpop.f32.mrf.mxu0
  %v653 = vpop.f32.mrf.mxu0
  %654 = vdwg.mxu0
  %vm655 = vcmask 7168
  %656 = vst.msk [vmem:[%s15] sm:$0xff] %vm655, %v650
  // Predicated region
  $region62: #{simplenet_v2_forward.1} parent=0 // pred_check
    _
  $region63: #{simplenet_v2_forward.1} parent=0 // pred_check_branch
    %658 = sbr.rel (0) target = $region65
  $region64: #{simplenet_v2_forward.1} parent=0 // pred_region
    _
  $region65: #{simplenet_v2_forward.1} parent=0 // pred_fallthru
    _
  // Predicated region
  $region66: #{simplenet_v2_forward.1} parent=0 // pred_check
    _
  $region67: #{simplenet_v2_forward.1} parent=0 // pred_check_branch
    %660 = sbr.rel (0) target = $region69
  $region68: #{simplenet_v2_forward.1} parent=0 // pred_region
    _
  $region69: #{simplenet_v2_forward.1} parent=0 // pred_fallthru
    _

</llo_original>
